<compile_context>
chip_gen: v7x
topology: tpu7x:2x2x1
jax: 0.10.0
libtpu: 0.0.40
codegen_flags: <defaults>
</compile_context>

<pallas_src>
import functools

import jax
import jax.numpy as jnp
from jax import lax
from jax.experimental import pallas as pl
from jax.experimental.pallas import tpu as pltpu


def _round_up(x, m):
    return ((x + m - 1) // m) * m


def _vmem_budgets():
    """Generation-aware (block_buffer_budget, vmem_limit) in bytes."""
    cap = None
    try:
        cap = int(getattr(pltpu.get_tpu_info(), "vmem_capacity_bytes", 0)) or None
    except Exception:
        cap = None
    if cap is None:
        cap = 64 * 1024 * 1024                      # conservative: v7x-class
    if cap >= 96 * 1024 * 1024:                     # v5e / v6e: 128 MiB VMEM
        return 56 * 1024 * 1024, 96 * 1024 * 1024
    return 36 * 1024 * 1024, 48 * 1024 * 1024       # v7x-class: 64 MiB VMEM


def _has_native_bf16_valu():
    """bf16 VALU exists on v6e / v7x; v5e and older upcast before subtracting."""
    try:
        kind = jax.devices()[0].device_kind.lower()
    except Exception:
        return False
    return not any(tag in kind for tag in ("v2", "v3", "v4", "v5"))


def _pick_tm(R, max_tm=512):
    """Row tile: multiple of 8 (or the full dim when R < 16).

    Guarantees >= 2 row blocks whenever R >= 16 so the 'parallel' grid axis
    can shard across v7x's two TensorCores.  Ragged last row blocks are fine:
    their garbage rows never survive the (bounds-masked) output writeback.
    """
    if R < 16:
        # TODO(synk): with a single row block one v7x TensorCore idles; a
        # 2-way split of the feature reduction onto a second 'parallel' axis
        # would recover it for these tiny workloads.
        return R
    if R <= 2 * max_tm:
        return _round_up((R + 1) // 2, 8)           # two (near-)balanced blocks
    return max_tm


def _semckd_sse_kernel(s_ref, t_ref, out_ref, *, feat, tf, out_lanes, native_diff):
    """Per-row partial SSE, reduced over the tiled feature axis into the
    lane-dense f32 output block (resident across the k axis)."""
    k = pl.program_id(1)

    @pl.when(k == 0)
    def _():
        out_ref[...] = jnp.zeros_like(out_ref)

    if native_diff:
        # bf16 subtract on packed vregs; upcast only the diff (v6e / v7x).
        d = (s_ref[...] - t_ref[...]).astype(jnp.float32)
    else:
        d = s_ref[...].astype(jnp.float32) - t_ref[...].astype(jnp.float32)

    if feat % tf != 0:
        # Ragged last feature tile: lanes past `feat` hold garbage -> zero them
        # before squaring (replaces the old wrapper-side jnp.pad).
        lane = lax.broadcasted_iota(jnp.int32, d.shape, 1)
        d = jnp.where(lane < (feat - k * tf), d, 0.0)

    d2 = d * d
    # Fold tf lanes into out_lanes with pure VPU adds; static 128-aligned lane
    # slices are vreg-column selects (no XLU reduce, no relayout).
    acc = d2[:, 0:out_lanes]
    for g in range(1, tf // out_lanes):
        acc = acc + d2[:, g * out_lanes:(g + 1) * out_lanes]
    out_ref[...] += acc


def semckd_loss(s_value, f_target, weight):
    """s_value, f_target: (num_stu, num_tea, bsz, *feature_dims), any float dtype;
    weight: (bsz, num_stu, num_tea).  Matches SemCKDLoss.forward."""
    assert s_value.shape == f_target.shape, "s_value / f_target shape mismatch"
    ns, nt, bsz = s_value.shape[:3]
    feat = 1
    for d in s_value.shape[3:]:
        feat *= int(d)
    R = ns * nt * bsz

    # Flatten to dense rows; keep native dtype (bf16 streams as bf16).
    s2 = s_value.reshape(R, feat)
    t2 = f_target.reshape(R, feat)
    pair_bytes = jnp.dtype(s2.dtype).itemsize + jnp.dtype(t2.dtype).itemsize

    block_budget, vmem_limit = _vmem_budgets()

    TM = _pick_tm(R)
    if feat >= 128:
        OUT_LANES = 128
        # 2 inputs x 2 pipeline buffers: 2 * TM * TF * pair_bytes <= budget.
        tf_budget = block_budget // (2 * TM * pair_bytes)
        tf_budget = max(128, (tf_budget // 128) * 128)
        TF = min(tf_budget, (feat // 128) * 128)
    else:
        OUT_LANES = feat
        TF = feat

    grid = (pl.cdiv(R, TM), pl.cdiv(feat, TF))

    native_diff = bool(
        s2.dtype == t2.dtype
        and s2.dtype == jnp.bfloat16
        and _has_native_bf16_valu()
    )

    kernel = functools.partial(
        _semckd_sse_kernel,
        feat=feat, tf=TF, out_lanes=OUT_LANES, native_diff=native_diff)

    partials = pl.pallas_call(
        kernel,
        out_shape=jax.ShapeDtypeStruct((R, OUT_LANES), jnp.float32),
        grid_spec=pltpu.PrefetchScalarGridSpec(
            num_scalar_prefetch=0,
            grid=grid,
            in_specs=[
                pl.BlockSpec((TM, TF), lambda m, k: (m, k)),
                pl.BlockSpec((TM, TF), lambda m, k: (m, k)),
            ],
            # Output block depends only on the row tile -> resident across k
            # (it IS the accumulator) and the writeback is lane-dense/unmasked.
            out_specs=pl.BlockSpec((TM, OUT_LANES), lambda m, k: (m, 0)),
        ),
        compiler_params=pltpu.CompilerParams(
            # Row-tile axis is independent -> megacore-shardable on v7x.
            dimension_semantics=("parallel", "arbitrary"),
            vmem_limit_bytes=vmem_limit,
        ),
    )(s2, t2)

    # Tiny finishing math in plain JAX (keeps the hot loop lane/DMA clean).
    sse = jnp.sum(partials, axis=-1)                 # (R,)   per-row SSE
    ind = sse.reshape(ns, nt, bsz) / float(feat)     # per-sample MSE
    ind = jnp.transpose(ind, (2, 0, 1))              # (bsz, ns, nt)
    return jnp.sum(weight.astype(jnp.float32) * ind) / (1.0 * bsz * ns)


def semckd_loss_ref(s_value, f_target, weight):
    """Plain-JAX reference matching the PyTorch forward exactly."""
    ns, nt, bsz = s_value.shape[:3]
    s = s_value.reshape(ns, nt, bsz, -1).astype(jnp.float32)
    t = f_target.reshape(ns, nt, bsz, -1).astype(jnp.float32)
    ind = jnp.mean((s - t) ** 2, axis=-1)            # (ns, nt, bsz)
    ind = jnp.transpose(ind, (2, 0, 1))              # (bsz, ns, nt)
    return jnp.sum(weight.astype(jnp.float32) * ind) / (1.0 * bsz * ns)


if __name__ == "__main__":
    # small, deterministic shapes consistent with the module's forward
    bsz, num_stu, num_tea = 2, 3, 4
    C, H, W = 4, 16, 16

    key = jax.random.PRNGKey(0)
    k_s, k_t, k_w = jax.random.split(key, 3)

    s_value = jax.random.normal(k_s, (num_stu, num_tea, bsz, C, H, W), jnp.float32)
    f_target = jax.random.normal(k_t, (num_stu, num_tea, bsz, C, H, W), jnp.float32)
    # attention-like weights, normalized over the teacher axis (as in SemCKD)
    weight = jax.nn.softmax(
        jax.random.normal(k_w, (bsz, num_stu, num_tea), jnp.float32), axis=-1)

    # f32 path
    loss = jax.block_until_ready(semckd_loss(s_value, f_target, weight))
    ref = jax.block_until_ready(semckd_loss_ref(s_value, f_target, weight))
    assert jnp.allclose(loss, ref, rtol=1e-5, atol=1e-5), (loss, ref)

    # bf16 path (streamed as bf16; diff may be taken in native bf16 on v6e/v7x)
    s_bf, t_bf = s_value.astype(jnp.bfloat16), f_target.astype(jnp.bfloat16)
    loss_bf = jax.block_until_ready(semckd_loss(s_bf, t_bf, weight))
    ref_bf = jax.block_until_ready(semckd_loss_ref(s_bf, t_bf, weight))
    assert jnp.allclose(loss_bf, ref_bf, rtol=1e-2, atol=1e-2), (loss_bf, ref_bf)

    # ragged path: feat (=300) not a multiple of 128 and R (=18) not a multiple
    # of TM — exercises the in-kernel lane mask + ragged row blocks, no jnp.pad.
    ns2, nt2, b2, C2, H2, W2 = 2, 3, 3, 3, 10, 10
    k_s2, k_t2, k_w2 = jax.random.split(jax.random.PRNGKey(1), 3)
    s2v = jax.random.normal(k_s2, (ns2, nt2, b2, C2, H2, W2), jnp.float32)
    t2v = jax.random.normal(k_t2, (ns2, nt2, b2, C2, H2, W2), jnp.float32)
    w2 = jax.nn.softmax(
        jax.random.normal(k_w2, (b2, ns2, nt2), jnp.float32), axis=-1)
    loss2 = jax.block_until_ready(semckd_loss(s2v, t2v, w2))
    ref2 = jax.block_until_ready(semckd_loss_ref(s2v, t2v, w2))
    assert jnp.allclose(loss2, ref2, rtol=1e-5, atol=1e-5), (loss2, ref2)

    print("KERNEL_OK")
</pallas_src>

<mosaic_0001>
module attributes {stable_mosaic.version = 11 : i64} {
  func.func @_semckd_sse_kernel(%arg0: i32, %arg1: i32, %arg2: memref<16x1024xf32, #tpu.memory_space<vmem>>, %arg3: memref<16x1024xf32, #tpu.memory_space<vmem>>, %arg4: memref<16x128xf32, #tpu.memory_space<vmem>>) attributes {dimension_semantics = [#tpu.dimension_semantics<parallel>, #tpu.dimension_semantics<arbitrary>], iteration_bounds = array<i64: 2, 1>, scalar_prefetch = 0 : i64, scratch_operands = 0 : i64, tpu.core_type = #tpu.core_type<tc>, window_params = [{transform_indices = @transform_0, window_bounds = array<i64: 16, 1024>}, {transform_indices = @transform_1, window_bounds = array<i64: 16, 1024>}, {transform_indices = @transform_2, window_bounds = array<i64: 16, 128>}]} {
    %c0_i32 = arith.constant 0 : i32
    %0 = arith.cmpi eq, %arg1, %c0_i32 : i32
    %1 = arith.extui %0 : i1 to i32
    %c0_i32_0 = arith.constant 0 : i32
    %2 = arith.cmpi ne, %1, %c0_i32_0 : i32
    scf.if %2 {
      %cst = arith.constant 0.000000e+00 : f32
      %25 = vector.broadcast %cst : f32 to vector<16x128xf32>
      %c0_8 = arith.constant 0 : index
      %c0_9 = arith.constant 0 : index
      %26 = vector.load %arg4[%c0_8, %c0_9] : memref<16x128xf32, #tpu.memory_space<vmem>>, vector<16x128xf32>
      tpu.vector_store %arg4[%c0_8, %c0_9], %25 {strides = array<i32>} : memref<16x128xf32, #tpu.memory_space<vmem>>, vector<16x128xf32>,
    } else {
    }
    %c0 = arith.constant 0 : index
    %c0_1 = arith.constant 0 : index
    %3 = vector.load %arg2[%c0, %c0_1] : memref<16x1024xf32, #tpu.memory_space<vmem>>, vector<16x1024xf32>
    %c0_2 = arith.constant 0 : index
    %c0_3 = arith.constant 0 : index
    %4 = vector.load %arg3[%c0_2, %c0_3] : memref<16x1024xf32, #tpu.memory_space<vmem>>, vector<16x1024xf32>
    %5 = arith.subf %3, %4 : vector<16x1024xf32>
    %6 = arith.mulf %5, %5 : vector<16x1024xf32>
    %7 = vector.extract_strided_slice %6 {offsets = [0, 0], sizes = [16, 128], strides = [1, 1]} : vector<16x1024xf32> to vector<16x128xf32>
    %8 = vector.extract_strided_slice %6 {offsets = [0, 128], sizes = [16, 128], strides = [1, 1]} : vector<16x1024xf32> to vector<16x128xf32>
    %9 = arith.addf %7, %8 : vector<16x128xf32>
    %10 = vector.extract_strided_slice %6 {offsets = [0, 256], sizes = [16, 128], strides = [1, 1]} : vector<16x1024xf32> to vector<16x128xf32>
    %11 = arith.addf %9, %10 : vector<16x128xf32>
    %12 = vector.extract_strided_slice %6 {offsets = [0, 384], sizes = [16, 128], strides = [1, 1]} : vector<16x1024xf32> to vector<16x128xf32>
    %13 = arith.addf %11, %12 : vector<16x128xf32>
    %14 = vector.extract_strided_slice %6 {offsets = [0, 512], sizes = [16, 128], strides = [1, 1]} : vector<16x1024xf32> to vector<16x128xf32>
    %15 = arith.addf %13, %14 : vector<16x128xf32>
    %16 = vector.extract_strided_slice %6 {offsets = [0, 640], sizes = [16, 128], strides = [1, 1]} : vector<16x1024xf32> to vector<16x128xf32>
    %17 = arith.addf %15, %16 : vector<16x128xf32>
    %18 = vector.extract_strided_slice %6 {offsets = [0, 768], sizes = [16, 128], strides = [1, 1]} : vector<16x1024xf32> to vector<16x128xf32>
    %19 = arith.addf %17, %18 : vector<16x128xf32>
    %20 = vector.extract_strided_slice %6 {offsets = [0, 896], sizes = [16, 128], strides = [1, 1]} : vector<16x1024xf32> to vector<16x128xf32>
    %21 = arith.addf %19, %20 : vector<16x128xf32>
    %c0_4 = arith.constant 0 : index
    %c0_5 = arith.constant 0 : index
    %22 = vector.load %arg4[%c0_4, %c0_5] : memref<16x128xf32, #tpu.memory_space<vmem>>, vector<16x128xf32>
    %23 = arith.addf %22, %21 : vector<16x128xf32>
    %c0_6 = arith.constant 0 : index
    %c0_7 = arith.constant 0 : index
    %24 = vector.load %arg4[%c0_6, %c0_7] : memref<16x128xf32, #tpu.memory_space<vmem>>, vector<16x128xf32>
    tpu.vector_store %arg4[%c0_6, %c0_7], %23 {strides = array<i32>} : memref<16x128xf32, #tpu.memory_space<vmem>>, vector<16x128xf32>,
    return
  }
  func.func @transform_0(%arg0: i32, %arg1: i32) -> (i32, i32) {
    %c0_i32 = arith.constant 0 : i32
    return %arg0, %arg1 : i32, i32
  }
  func.func @transform_1(%arg0: i32, %arg1: i32) -> (i32, i32) {
    %c0_i32 = arith.constant 0 : i32
    return %arg0, %arg1 : i32, i32
  }
  func.func @transform_2(%arg0: i32, %arg1: i32) -> (i32, i32) {
    %c0_i32 = arith.constant 0 : i32
    %c0_i32_0 = arith.constant 0 : i32
    return %arg0, %c0_i32 : i32, i32
  }
}

</mosaic_0001>

<llo_original>
// kernel: tpu_custom_call.1
$region0: #{tpu_custom_call.1}
  #allocation0 [shape = 'u32[]', space=smem, size = 0x4, offset = 0x4, fixed_abs, tag = 'smem constant byte address 0x4 - core index']
  #allocation1 [shape = 'u32[144,128]{1,0:T(1,128)}', space=vmem, size = 0x12000, scoped, tag = 'internal scratch']
  %s0 = inlined_call_operand.hbm [shape: f32[24,1024], index: 0, kind: input, shape index: {}]
  %s1 = inlined_call_operand.hbm [shape: f32[24,1024], index: 1, kind: input, shape index: {}]
  %s2 = inlined_call_operand.hbm [shape: f32[24,128], index: 2, kind: output, shape index: {}]
  %s3 = sld [smem:[#allocation0]]
  $region53: #{tpu_custom_call.1} parent=0
    _
  %s5 = ssub.s32 1, %s3
  %s6 = scalar_select 0, %s5, %s3
  $region1: #{tpu_custom_call.1} parent=0
    #allocation2 [shape = 'u8[131072]{0}', space=vmem, size = 0x20000, scoped, tag = 'input window, operand 0']
    #allocation3 [shape = 's32[2]{0}', space=sflag, size = 0x8, scoped, tag = 'scoped memory for tpu_custom_call.1']
    #allocation4 [shape = 's32[2]{0}', space=sflag, size = 0x8, scoped, tag = 'scoped memory for tpu_custom_call.1']
    #allocation5 [shape = 'u8[131072]{0}', space=vmem, size = 0x20000, scoped, tag = 'input window, operand 1']
    #allocation6 [shape = 's32[2]{0}', space=sflag, size = 0x8, scoped, tag = 'scoped memory for tpu_custom_call.1']
    #allocation7 [shape = 'u8[16384]{0}', space=vmem, size = 0x4000, scoped, tag = 'output window, operand 0']
    %7 = vsyncpa [#allocation3], 0
    %s8 = scalar_lea.sflag [#allocation3], 1
    %9 = vsyncpa %s8, 0
    %10 = vsyncpa [#allocation6], 0
    %s11 = scalar_lea.sflag [#allocation6], 1
    %12 = vsyncpa %s11, 0
    %13 = vsyncpa [#allocation4], 0
    %s14 = scalar_lea.sflag [#allocation4], 1
    %15 = vsyncpa %s14, 0
    loop: start=0, step=1, limit=4
    $region2: #{tpu_custom_call.1} parent=1 // loop_pre_header
      _
    $region3: #{tpu_custom_call.1} parent=1 // loop_header
      %s17 = sphi 0, %s21
      %p18 = scmp.ge.s32.totalorder %s17, 4
      %s24 = sphi 0, %s36
      %s25 = sphi 0, %s32
      %s26 = sphi 0, %s24
      %s27 = sphi 0, %s25
      %s28 = sphi 0, %s26
      %s29 = sphi 0, %s27
      %s41 = sphi 0, %s43
      %s44 = sphi 0, %s41
      %s45 = sphi 0, %s44
      %s61 = sphi 0, %s45
      %s69 = sphi 0, %s71
      %s72 = sphi 0, %s69
      %s73 = sphi 0, %s72
      %s89 = sphi 0, %s73
      %s95 = sphi 0, %s97
      %s98 = sphi 0, %s95
      %s99 = sphi 0, %s98
      %s115 = sphi 0, %s99
    $region4: #{tpu_custom_call.1} parent=1 // loop_header_branch
      %20 = sbr.rel (%p18) target = $region8
    $region5: #{tpu_custom_call.1} parent=1 // loop_body
      %s22 = ssub.s32 %s17, 1
      %s23 = ssub.s32 %s17, 2
      %s30 = sadd.s32 1, %s25
      %p31 = scmp.ge.s32.totalorder %s30, 1
      %s32 = scalar_select %p31, 0, %s30
      %s33 = sadd.s32 1, %s24
      %s34 = scalar_select %p31, %s33, %s24
      %p35 = scmp.ge.s32.totalorder %s34, 2
      %s36 = scalar_select %p35, 0, %s34
      %s37 = ssub.s32 %s24, %s36
      %s38 = ssub.s32 %s25, %s32
      %s39 = sor.u32 %s37, %s38
      %p40 = scmp.eq.s32.totalorder %s39, 0
      %s42 = sadd.s32 %s41, 1
      %s43 = scalar_select %p40, %s41, %s42
      %p46 = pneg %p40
      %p47 = scmp.eq.s32.totalorder %s17, 1
      %p48 = por %p46, %p47
      %p49 = scmp.ne.s32.totalorder %s41, %s44
      %p50 = scmp.eq.s32.totalorder %s17, 0
      %p51 = por %p49, %p50
      %p52 = scmp.ne.s32.totalorder %s41, %s44
      %p53 = scmp.eq.s32.totalorder %s22, 1
      %p54 = por %p52, %p53
      %p55 = scmp.ne.s32.totalorder %s44, %s45
      %p56 = scmp.eq.s32.totalorder %s22, 0
      %p57 = por %p55, %p56
      %p58 = scmp.ne.s32.totalorder %s44, %s45
      %p59 = scmp.eq.s32.totalorder %s23, 1
      %p60 = por %p58, %p59
      %p62 = scmp.ne.s32.totalorder %s45, %s61
      %p63 = scmp.eq.s32.totalorder %s23, 0
      %p64 = por %p62, %p63
      %s65 = ssub.s32 %s24, %s36
      %s66 = ssub.s32 %s25, %s32
      %s67 = sor.u32 %s65, %s66
      %p68 = scmp.eq.s32.totalorder %s67, 0
      %s70 = sadd.s32 %s69, 1
      %s71 = scalar_select %p68, %s69, %s70
      %p74 = pneg %p68
      %p75 = scmp.eq.s32.totalorder %s17, 1
      %p76 = por %p74, %p75
      %p77 = scmp.ne.s32.totalorder %s69, %s72
      %p78 = scmp.eq.s32.totalorder %s17, 0
      %p79 = por %p77, %p78
      %p80 = scmp.ne.s32.totalorder %s69, %s72
      %p81 = scmp.eq.s32.totalorder %s22, 1
      %p82 = por %p80, %p81
      %p83 = scmp.ne.s32.totalorder %s72, %s73
      %p84 = scmp.eq.s32.totalorder %s22, 0
      %p85 = por %p83, %p84
      %p86 = scmp.ne.s32.totalorder %s72, %s73
      %p87 = scmp.eq.s32.totalorder %s23, 1
      %p88 = por %p86, %p87
      %p90 = scmp.ne.s32.totalorder %s73, %s89
      %p91 = scmp.eq.s32.totalorder %s23, 0
      %p92 = por %p90, %p91
      %s93 = ssub.s32 %s24, %s36
      %p94 = scmp.eq.s32.totalorder %s93, 0
      %s96 = sadd.s32 %s95, 1
      %s97 = scalar_select %p94, %s95, %s96
      %p100 = pneg %p94
      %p101 = scmp.eq.s32.totalorder %s17, 1
      %p102 = por %p100, %p101
      %p103 = scmp.ne.s32.totalorder %s95, %s98
      %p104 = scmp.eq.s32.totalorder %s17, 0
      %p105 = por %p103, %p104
      %p106 = scmp.ne.s32.totalorder %s95, %s98
      %p107 = scmp.eq.s32.totalorder %s22, 1
      %p108 = por %p106, %p107
      %p109 = scmp.ne.s32.totalorder %s98, %s99
      %p110 = scmp.eq.s32.totalorder %s22, 0
      %p111 = por %p109, %p110
      %p112 = scmp.ne.s32.totalorder %s98, %s99
      %p113 = scmp.eq.s32.totalorder %s23, 1
      %p114 = por %p112, %p113
      %p116 = scmp.ne.s32.totalorder %s99, %s115
      %p117 = scmp.eq.s32.totalorder %s23, 0
      %p118 = por %p116, %p117
      %p119 = scmp.le.s32.totalorder 1, %s17
      %p120 = scmp.lt.s32.totalorder %s17, 3
      %p121 = pnand %p119, %p120
      %p122 = pneg %p121
      // Predicated region
      $region9: #{tpu_custom_call.1} parent=5 // pred_check
        _
      $region10: #{tpu_custom_call.1} parent=5 // pred_check_branch
        %124 = sbr.rel (%p121) target = $region12
      $region11: #{tpu_custom_call.1} parent=5 // pred_region
        %s125 = ssub.s32 %s17, 1
      $region12: #{tpu_custom_call.1} parent=5 // pred_fallthru
        _
      %p126 = scmp.lt.s32.totalorder %s17, 2
      // Predicated region
      $region13: #{tpu_custom_call.1} parent=5 // pred_check
        %p127 = pneg %p126
      $region14: #{tpu_custom_call.1} parent=5 // pred_check_branch
        %129 = sbr.rel (%p127) target = $region16
      $region15: #{tpu_custom_call.1} parent=5 // pred_region
        // Predicated region
        $region17: #{tpu_custom_call.1} parent=15 // pred_check
          %p130 = pneg %p51
        $region18: #{tpu_custom_call.1} parent=15 // pred_check_branch
          %132 = sbr.rel (%p130) target = $region20
        $region19: #{tpu_custom_call.1} parent=15 // pred_region
          %s133 = sand.u32 %s41, 1
          %s134 = scalar_lea.sflag [#allocation3], %s133
          %s135 = sand.u32 %s41, 1
          %s136 = smul.addr %s135, 128
          %s137 = scalar_lea.vmem [#allocation2], %s136
          %s138 = smul.u32 2, %s24
          %s139 = smul.u32 8, %s25
          %s140 = ssub.s32 3, %s138
          %p141 = scmp.lt.s32.totalorder %s140, 2
          %s142 = scalar_select %p141, %s140, 2
          %s143 = smul.u32 128, %s142
          %s144 = smul.u32 %s143, 8
          %s146 = ssub.s32 2048, %s144
          %147 = vsyncadd %s134, %s146
          %p148 = scmp.ne.s32.totalorder 0, %s144
          %s149 = smul.addr %s138, 8
          %s150 = sadd.s32 %s139, %s149
          %s151 = smul.addr %s150, 128
          %s152 = scalar_lea.hbm %s0, %s151
          %s153 = smul.u32 64, %s142
          %s154 = sshll.u32 %s137, 4
          %s155 = int_to_ptr.vmem [resolvable:$true] %s154
          %s156 = sshll.u32 %s153, 4
          %160 = dma.hbm_to_vmem [thread:$0]  (%p148), %s152, %s156, %s155, %s134, 1024, 1024, 64
        $region20: #{tpu_custom_call.1} parent=15 // pred_fallthru
          _
        // Predicated region
        $region21: #{tpu_custom_call.1} parent=15 // pred_check
          %p161 = pneg %p79
        $region22: #{tpu_custom_call.1} parent=15 // pred_check_branch
          %163 = sbr.rel (%p161) target = $region24
        $region23: #{tpu_custom_call.1} parent=15 // pred_region
          %s164 = sand.u32 %s69, 1
          %s165 = scalar_lea.sflag [#allocation6], %s164
          %s166 = sand.u32 %s69, 1
          %s167 = smul.addr %s166, 128
          %s168 = scalar_lea.vmem [#allocation5], %s167
          %s169 = smul.u32 2, %s24
          %s170 = smul.u32 8, %s25
          %s171 = ssub.s32 3, %s169
          %p172 = scmp.lt.s32.totalorder %s171, 2
          %s173 = scalar_select %p172, %s171, 2
          %s174 = smul.u32 128, %s173
          %s175 = smul.u32 %s174, 8
          %s177 = ssub.s32 2048, %s175
          %178 = vsyncadd %s165, %s177
          %p179 = scmp.ne.s32.totalorder 0, %s175
          %s180 = smul.addr %s169, 8
          %s181 = sadd.s32 %s170, %s180
          %s182 = smul.addr %s181, 128
          %s183 = scalar_lea.hbm %s1, %s182
          %s184 = smul.u32 64, %s173
          %s185 = sshll.u32 %s168, 4
          %s186 = int_to_ptr.vmem [resolvable:$true] %s185
          %s187 = sshll.u32 %s184, 4
          %191 = dma.hbm_to_vmem [thread:$0]  (%p179), %s183, %s187, %s186, %s165, 1024, 1024, 64
        $region24: #{tpu_custom_call.1} parent=15 // pred_fallthru
          _
      $region16: #{tpu_custom_call.1} parent=5 // pred_fallthru
        _
      %p192 = scmp.le.s32.totalorder 1, %s17
      %p193 = scmp.lt.s32.totalorder %s17, 3
      %p194 = pnand %p192, %p193
      %p195 = pneg %p194
      // Predicated region
      $region25: #{tpu_custom_call.1} parent=5 // pred_check
        _
      $region26: #{tpu_custom_call.1} parent=5 // pred_check_branch
        %197 = sbr.rel (%p194) target = $region28
      $region27: #{tpu_custom_call.1} parent=5 // pred_region
        %s198 = ssub.s32 %s17, 1
        %s199 = sand.u32 %s44, 1
        %s200 = scalar_lea.sflag [#allocation3], %s199
        %s201 = sand.u32 %s44, 1
        %s202 = smul.addr %s201, 128
        %s203 = scalar_lea.vmem [#allocation2], %s202
        // Predicated region
        $region29: #{tpu_custom_call.1} parent=27 // pred_check
          %p204 = pneg %p57
        $region30: #{tpu_custom_call.1} parent=27 // pred_check_branch
          %206 = sbr.rel (%p204) target = $region32
        $region31: #{tpu_custom_call.1} parent=27 // pred_region
          %207 = dma.done %s200, 2048
        $region32: #{tpu_custom_call.1} parent=27 // pred_fallthru
          _
        %s208 = sand.u32 %s72, 1
        %s209 = scalar_lea.sflag [#allocation6], %s208
        %s210 = sand.u32 %s72, 1
        %s211 = smul.addr %s210, 128
        %s212 = scalar_lea.vmem [#allocation5], %s211
        // Predicated region
        $region33: #{tpu_custom_call.1} parent=27 // pred_check
          %p213 = pneg %p85
        $region34: #{tpu_custom_call.1} parent=27 // pred_check_branch
          %215 = sbr.rel (%p213) target = $region36
        $region35: #{tpu_custom_call.1} parent=27 // pred_region
          %216 = dma.done %s209, 2048
        $region36: #{tpu_custom_call.1} parent=27 // pred_fallthru
          _
        %s217 = sand.u32 %s44, 1
        %s218 = scalar_lea.sflag [#allocation3], %s217
        %s219 = sand.u32 %s44, 1
        %s220 = smul.addr %s219, 128
        %s221 = scalar_lea.vmem [#allocation2], %s220
        %p222 = pneg %p57
        %p223 = pneg %p54
        %s224 = sand.u32 %s72, 1
        %s225 = scalar_lea.sflag [#allocation6], %s224
        %s226 = sand.u32 %s72, 1
        %s227 = smul.addr %s226, 128
        %s228 = scalar_lea.vmem [#allocation5], %s227
        %p229 = pneg %p85
        %p230 = pneg %p82
        %p231 = pneg %p111
        %p232 = pneg %p108
        %s233 = sand.u32 %s98, 1
        %s234 = scalar_lea.sflag [#allocation4], %s233
        %s235 = sand.u32 %s98, 1
        %s236 = smul.addr %s235, 16
        %s237 = scalar_lea.vmem [#allocation7], %s236
        %s238 = smul.u32 2, %s26
        %s239 = smul.u32 8, %s27
        %s240 = ssub.s32 3, %s238
        %p241 = scmp.lt.s32.totalorder %s240, 2
        %s242 = scalar_select %p241, %s240, 2
        %s243 = smul.u32 128, %s242
        %s244 = smul.u32 %s243, 8
        %s245 = smul.u32 2, %s26
        %s246 = smul.u32 8, %s27
        %s247 = ssub.s32 3, %s245
        %p248 = scmp.lt.s32.totalorder %s247, 2
        %s249 = scalar_select %p248, %s247, 2
        %s250 = smul.u32 128, %s249
        %s251 = smul.u32 %s250, 8
        %s252 = smul.u32 2, %s26
        %s253 = ssub.s32 3, %s252
        %p254 = scmp.lt.s32.totalorder %s253, 2
        %s255 = scalar_select %p254, %s253, 2
        %s256 = smul.u32 128, %s255
        %p257 = scmp.eq.s32.totalorder %s27, 0
        // Predicated region
        $region37: #{tpu_custom_call.1} parent=27 // pred_check
          %p258 = pneg %p257
        $region38: #{tpu_custom_call.1} parent=27 // pred_check_branch
          %260 = sbr.rel (%p258) target = $region40
        $region39: #{tpu_custom_call.1} parent=27 // pred_region
          %261 = vst [vmem:[%s237] sm:$0xff] 0.0
          %262 = vst [vmem:[%s237 + $0x8] sm:$0xff] 0.0
        $region40: #{tpu_custom_call.1} parent=27 // pred_fallthru
          _
        %v263 = vld [vmem:[%s203] sm:$0xff]
        %v264 = vld [vmem:[%s203 + $0x8] sm:$0xff]
        %v265 = vld [vmem:[%s203 + $0x10] sm:$0xff]
        %v266 = vld [vmem:[%s203 + $0x18] sm:$0xff]
        %v267 = vld [vmem:[%s203 + $0x20] sm:$0xff]
        %v268 = vld [vmem:[%s203 + $0x28] sm:$0xff]
        %v269 = vld [vmem:[%s203 + $0x30] sm:$0xff]
        %v270 = vld [vmem:[%s203 + $0x38] sm:$0xff]
        %v271 = vld [vmem:[%s203 + $0x40] sm:$0xff]
        %v272 = vld [vmem:[%s203 + $0x48] sm:$0xff]
        %v273 = vld [vmem:[%s203 + $0x50] sm:$0xff]
        %v274 = vld [vmem:[%s203 + $0x58] sm:$0xff]
        %v275 = vld [vmem:[%s203 + $0x60] sm:$0xff]
        %v276 = vld [vmem:[%s203 + $0x68] sm:$0xff]
        %v277 = vld [vmem:[%s203 + $0x70] sm:$0xff]
        %v278 = vld [vmem:[%s203 + $0x78] sm:$0xff]
        %v279 = vld [vmem:[%s212] sm:$0xff]
        %v280 = vld [vmem:[%s212 + $0x8] sm:$0xff]
        %v281 = vld [vmem:[%s212 + $0x10] sm:$0xff]
        %v282 = vld [vmem:[%s212 + $0x18] sm:$0xff]
        %v283 = vld [vmem:[%s212 + $0x20] sm:$0xff]
        %v284 = vld [vmem:[%s212 + $0x28] sm:$0xff]
        %v285 = vld [vmem:[%s212 + $0x30] sm:$0xff]
        %v286 = vld [vmem:[%s212 + $0x38] sm:$0xff]
        %v287 = vld [vmem:[%s212 + $0x40] sm:$0xff]
        %v288 = vld [vmem:[%s212 + $0x48] sm:$0xff]
        %v289 = vld [vmem:[%s212 + $0x50] sm:$0xff]
        %v290 = vld [vmem:[%s212 + $0x58] sm:$0xff]
        %v291 = vld [vmem:[%s212 + $0x60] sm:$0xff]
        %v292 = vld [vmem:[%s212 + $0x68] sm:$0xff]
        %v293 = vld [vmem:[%s212 + $0x70] sm:$0xff]
        %v294 = vld [vmem:[%s212 + $0x78] sm:$0xff]
        %v295 = vsub.f32 %v263, %v279
        %v296 = vsub.f32 %v264, %v280
        %v297 = vsub.f32 %v265, %v281
        %v298 = vsub.f32 %v266, %v282
        %v299 = vsub.f32 %v267, %v283
        %v300 = vsub.f32 %v268, %v284
        %v301 = vsub.f32 %v269, %v285
        %v302 = vsub.f32 %v270, %v286
        %v303 = vsub.f32 %v271, %v287
        %v304 = vsub.f32 %v272, %v288
        %v305 = vsub.f32 %v273, %v289
        %v306 = vsub.f32 %v274, %v290
        %v307 = vsub.f32 %v275, %v291
        %v308 = vsub.f32 %v276, %v292
        %v309 = vsub.f32 %v277, %v293
        %v310 = vsub.f32 %v278, %v294
        %v311 = vmul.f32 %v295, %v295
        %v312 = vmul.f32 %v296, %v296
        %v313 = vmul.f32 %v297, %v297
        %v314 = vmul.f32 %v298, %v298
        %v315 = vmul.f32 %v299, %v299
        %v316 = vmul.f32 %v300, %v300
        %v317 = vmul.f32 %v301, %v301
        %v318 = vmul.f32 %v302, %v302
        %v319 = vmul.f32 %v303, %v303
        %v320 = vmul.f32 %v304, %v304
        %v321 = vmul.f32 %v305, %v305
        %v322 = vmul.f32 %v306, %v306
        %v323 = vmul.f32 %v307, %v307
        %v324 = vmul.f32 %v308, %v308
        %v325 = vmul.f32 %v309, %v309
        %v326 = vmul.f32 %v310, %v310
        %v327 = vadd.f32 %v311, %v312
        %v328 = vadd.f32 %v319, %v320
        %v329 = vadd.f32 %v327, %v313
        %v330 = vadd.f32 %v328, %v321
        %v331 = vadd.f32 %v329, %v314
        %v332 = vadd.f32 %v330, %v322
        %v333 = vadd.f32 %v331, %v315
        %v334 = vadd.f32 %v332, %v323
        %v335 = vadd.f32 %v333, %v316
        %v336 = vadd.f32 %v334, %v324
        %v337 = vadd.f32 %v335, %v317
        %v338 = vadd.f32 %v336, %v325
        %v339 = vadd.f32 %v337, %v318
        %v340 = vadd.f32 %v338, %v326
        %v341 = vld [vmem:[%s237] sm:$0xff]
        %v342 = vld [vmem:[%s237 + $0x8] sm:$0xff]
        %v343 = vadd.f32 %v341, %v339
        %v344 = vadd.f32 %v342, %v340
        %345 = vst [vmem:[%s237] sm:$0xff] %v343
        %346 = vst [vmem:[%s237 + $0x8] sm:$0xff] %v344
        %s347 = sand.u32 %s98, 1
        %s348 = scalar_lea.sflag [#allocation4], %s347
        %s349 = sand.u32 %s98, 1
        %s350 = smul.addr %s349, 16
        %s351 = scalar_lea.vmem [#allocation7], %s350
        // Predicated region
        $region41: #{tpu_custom_call.1} parent=27 // pred_check
          %p352 = pneg %p108
        $region42: #{tpu_custom_call.1} parent=27 // pred_check_branch
          %354 = sbr.rel (%p352) target = $region44
        $region43: #{tpu_custom_call.1} parent=27 // pred_region
          %s355 = smul.u32 2, %s26
          %s356 = ssub.s32 3, %s355
          %p357 = scmp.lt.s32.totalorder %s356, 2
          %s358 = scalar_select %p357, %s356, 2
          %s359 = smul.u32 128, %s358
          %s361 = ssub.s32 256, %s359
          %362 = vsyncadd %s348, %s361
          %p363 = scmp.ne.s32.totalorder 0, %s359
          %s364 = smul.addr %s355, 128
          %s365 = scalar_lea.hbm %s2, %s364
          %s366 = smul.u32 8, %s358
          %s367 = sshll.u32 %s351, 4
          %s368 = int_to_ptr.vmem [resolvable:$true] %s367
          %s369 = sshll.u32 %s366, 4
          %373 = dma.vmem_to_hbm [thread:$0]  (%p363), %s368, %s369, %s365, %s348, 128, 128, 8
        $region44: #{tpu_custom_call.1} parent=27 // pred_fallthru
          _
      $region28: #{tpu_custom_call.1} parent=5 // pred_fallthru
        _
      %p374 = scmp.le.s32.totalorder 2, %s17
      // Predicated region
      $region45: #{tpu_custom_call.1} parent=5 // pred_check
        %p375 = pneg %p374
      $region46: #{tpu_custom_call.1} parent=5 // pred_check_branch
        %377 = sbr.rel (%p375) target = $region48
      $region47: #{tpu_custom_call.1} parent=5 // pred_region
        %s378 = ssub.s32 %s17, 2
        // Predicated region
        $region49: #{tpu_custom_call.1} parent=47 // pred_check
          %p379 = pneg %p114
        $region50: #{tpu_custom_call.1} parent=47 // pred_check_branch
          %381 = sbr.rel (%p379) target = $region52
        $region51: #{tpu_custom_call.1} parent=47 // pred_region
          %s382 = sand.u32 %s99, 1
          %s383 = scalar_lea.sflag [#allocation4], %s382
          %s384 = sand.u32 %s99, 1
          %s385 = smul.addr %s384, 16
          %s386 = scalar_lea.vmem [#allocation7], %s385
          %387 = dma.done %s383, 256
        $region52: #{tpu_custom_call.1} parent=47 // pred_fallthru
          _
      $region48: #{tpu_custom_call.1} parent=5 // pred_fallthru
        _
    $region6: #{tpu_custom_call.1} parent=1 // loop_footer
      %s21 = sadd.s32 1, %s17
    $region7: #{tpu_custom_call.1} parent=1 // loop_footer_branch
      %16 = sbr.rel target = $region3
    $region8: #{tpu_custom_call.1} parent=1 // loop_exit
      _
    %388 = vsyncpa [#allocation3], 1
    %s389 = scalar_lea.sflag [#allocation3], 1
    %390 = vsyncpa %s389, 1
    %391 = vsyncpa [#allocation6], 1
    %s392 = scalar_lea.sflag [#allocation6], 1
    %393 = vsyncpa %s392, 1
    %394 = vsyncpa [#allocation4], 1
    %s395 = scalar_lea.sflag [#allocation4], 1
    %396 = vsyncpa %s395, 1

</llo_original>
